<compile_context>
chip_gen: v7x
topology: tpu7x:2x2x1
jax: 0.10.0
libtpu: 0.0.40
codegen_flags: <defaults>
</compile_context>

<pallas_src>
import jax
import jax.numpy as jnp
from jax.experimental import pallas as pl
from jax.experimental.pallas import tpu as pltpu


def _chomp_copy_kernel(x_ref, o_ref):
    # (tile_rows, tile_l) VMEM tiles — straight copy.  Ragged tail tiles are
    # handled by Pallas partial-block semantics: data read past l_out / L is
    # never stored, and out-of-range output lanes are masked on writeback.
    o_ref[...] = x_ref[...]


_LANE = 128
_TARGET_BLOCK_BYTES = 4 << 20   # ~4 MiB per block buffer (~16 MiB with dbl-buffered in+out)
_MIN_SPLIT_BYTES = 2 << 20      # force >=2 grid blocks above this (v7x: 2 TensorCores)


def _sublane(itemsize: int) -> int:
    # Packed sublane multiple: f32 -> 8, bf16/f16 -> 16, int8/fp8 -> 32.
    return {1: 32, 2: 16}.get(itemsize, 8)


def _pick_tiles(rows: int, l_out: int, itemsize: int):
    sub = _sublane(itemsize)
    l_padded = _LANE * pl.cdiv(l_out, _LANE)
    elems = _TARGET_BLOCK_BYTES // itemsize

    # Lane axis first (lane-dense tiles -> unmasked vst on all but the last
    # L-tile).  Budget assumes the minimal sub-row tile; sub*itemsize == 32 B
    # for all supported dtypes, so the lane cap is dtype-invariant.
    tile_l = min(l_padded, max(_LANE, (elems // sub) // _LANE * _LANE))

    # Then grow rows to fill the byte budget.  tile_rows is either the full
    # row extent (always legal) or a multiple of the sublane unit.
    rows_fit = elems // tile_l
    if rows_fit >= rows:
        tile_rows = rows
    else:
        tile_rows = max(sub, (rows_fit // sub) * sub)

    # v7x: guarantee >=2 parallel blocks when the slab is big enough that an
    # extra grid step is noise, so both TensorCores get work.
    covers_all = tile_rows >= rows and tile_l >= l_padded
    if covers_all and rows * l_padded * itemsize > _MIN_SPLIT_BYTES:
        lane_blocks = l_padded // _LANE
        if lane_blocks >= 2:
            tile_l = _LANE * pl.cdiv(lane_blocks, 2)
        elif rows > sub:
            tile_rows = max(sub, (pl.cdiv(rows, 2) // sub) * sub)

    return tile_rows, tile_l


def chomp1d(x: jax.Array, chomp_size: int, *, use_pallas=None,
            fastpath_bytes: int = 1 << 20) -> jax.Array:
    """Pallas equivalent of Chomp1d(chomp_size)(x) for x of shape (N, C, L)."""
    n, c, l = x.shape
    if not (0 < chomp_size < l):
        raise ValueError("chomp_size must be a static Python int in (0, L)")
    l_out = l - chomp_size
    rows = n * c
    itemsize = x.dtype.itemsize

    if use_pallas is None:
        # Fast path for tiny slabs / sub-128-lane outputs: fixed pallas_call +
        # grid-step overhead dwarfs the copy; a plain XLA slice is strictly
        # cheaper there (perf review item).
        use_pallas = (l_out >= _LANE) and (rows * l_out * itemsize > fastpath_bytes)

    if not use_pallas:
        return x[:, :, :l_out]

    # Collapse (N, C) -> rows: free reshape (leading dims only) giving a
    # lane-dense 2-D slab.
    x2d = x.reshape(rows, l)
    tile_rows, tile_l = _pick_tiles(rows, l_out, itemsize)
    grid = (pl.cdiv(rows, tile_rows), pl.cdiv(l_out, tile_l))

    out2d = pl.pallas_call(
        _chomp_copy_kernel,
        out_shape=jax.ShapeDtypeStruct((rows, l_out), x.dtype),
        grid=grid,
        # Input blocked over the L_out prefix only: the grid never steps into
        # the chomped tail (beyond at most one partial last tile), so the tail
        # is never DMA'd from HBM.
        in_specs=[pl.BlockSpec((tile_rows, tile_l), lambda i, j: (i, j))],
        out_specs=pl.BlockSpec((tile_rows, tile_l), lambda i, j: (i, j)),
        compiler_params=pltpu.CompilerParams(
            dimension_semantics=("parallel", "parallel"),
            vmem_limit_bytes=32 * 1024 * 1024,
        ),
    )(x2d)

    return out2d.reshape(n, c, l_out)


if __name__ == "__main__":
    key = jax.random.PRNGKey(0)
    k1, k2, k3 = jax.random.split(key, 3)

    def check(x, chomp, **kw):
        out = jax.block_until_ready(chomp1d(x, chomp, **kw))
        ref = x[:, :, :-chomp]
        assert out.shape == ref.shape, (out.shape, ref.shape)
        assert out.dtype == x.dtype
        assert jnp.array_equal(out, ref)
        return out

    # 1) Tiny TCN-style slab (2, 4, 16), chomp=3 -> auto fast path (XLA slice).
    x_small = jax.random.normal(k1, (2, 4, 16), dtype=jnp.float32)
    check(x_small, 3)

    # 2) Pallas path, l_out an exact multiple of 128 (fully unmasked stores).
    x_mid = jax.random.normal(k2, (2, 8, 650), dtype=jnp.float32)
    check(x_mid, 10, use_pallas=True)          # l_out = 640 = 5 * 128

    # 3) Pallas path, bf16, ragged lane tail (l_out = 687): the last block
    #    extends past both l_out and L -> exercises partial-block read +
    #    masked store + dtype-aware sublane tiling.
    x_rag = jax.random.normal(k3, (2, 8, 700), dtype=jnp.bfloat16)
    check(x_rag, 13, use_pallas=True)

    print("KERNEL_OK")
</pallas_src>

<mosaic_0001>
module attributes {stable_mosaic.version = 11 : i64} {
  func.func @_chomp_copy_kernel(%arg0: i32, %arg1: i32, %arg2: memref<16x640xf32, #tpu.memory_space<vmem>>, %arg3: memref<16x640xf32, #tpu.memory_space<vmem>>) attributes {dimension_semantics = [#tpu.dimension_semantics<parallel>, #tpu.dimension_semantics<parallel>], iteration_bounds = array<i64: 1, 1>, scalar_prefetch = 0 : i64, scratch_operands = 0 : i64, tpu.core_type = #tpu.core_type<tc>, window_params = [{transform_indices = @transform_0, window_bounds = array<i64: 16, 640>}, {transform_indices = @transform_1, window_bounds = array<i64: 16, 640>}]} {
    %c0 = arith.constant 0 : index
    %c0_0 = arith.constant 0 : index
    %0 = vector.load %arg2[%c0, %c0_0] : memref<16x640xf32, #tpu.memory_space<vmem>>, vector<16x640xf32>
    %c0_1 = arith.constant 0 : index
    %c0_2 = arith.constant 0 : index
    %1 = vector.load %arg3[%c0_1, %c0_2] : memref<16x640xf32, #tpu.memory_space<vmem>>, vector<16x640xf32>
    tpu.vector_store %arg3[%c0_1, %c0_2], %0 {strides = array<i32>} : memref<16x640xf32, #tpu.memory_space<vmem>>, vector<16x640xf32>,
    return
  }
  func.func @transform_0(%arg0: i32, %arg1: i32) -> (i32, i32) {
    %c0_i32 = arith.constant 0 : i32
    return %arg0, %arg1 : i32, i32
  }
  func.func @transform_1(%arg0: i32, %arg1: i32) -> (i32, i32) {
    %c0_i32 = arith.constant 0 : i32
    return %arg0, %arg1 : i32, i32
  }
}

</mosaic_0001>

<llo_original>
// kernel: tpu_custom_call.1
$region0: #{tpu_custom_call.1}
  #allocation0 [shape = 'u32[]', space=smem, size = 0x4, offset = 0x4, fixed_abs, tag = 'smem constant byte address 0x4 - core index']
  #allocation1 [shape = 'u32[144,128]{1,0:T(1,128)}', space=vmem, size = 0x12000, scoped, tag = 'internal scratch']
  %s0 = inlined_call_operand.hbm [shape: f32[16,650], index: 0, kind: input, shape index: {}]
  %s1 = inlined_call_operand.hbm [shape: f32[16,640], index: 1, kind: output, shape index: {}]
  %s2 = sld [smem:[#allocation0]]
  $region18: #{tpu_custom_call.1} parent=0
    _
  %s4 = ssub.s32 1, %s2
  %s5 = scalar_select 0, %s4, %s2
  $region1: #{tpu_custom_call.1} parent=0
    #allocation2 [shape = 'u8[40960]{0}', space=vmem, size = 0xa000, scoped, tag = 'input window, operand 0, single buffered']
    #allocation3 [shape = 's32[1]{0}', space=sflag, size = 0x4, scoped, tag = 'scoped memory for tpu_custom_call.1']
    #allocation4 [shape = 's32[1]{0}', space=sflag, size = 0x4, scoped, tag = 'scoped memory for tpu_custom_call.1']
    #allocation5 [shape = 'u8[40960]{0}', space=vmem, size = 0xa000, scoped, tag = 'output window, operand 0, single buffered']
    %6 = vsyncpa [#allocation3], 0
    %7 = vsyncpa [#allocation4], 0
    // Predicated region
    $region2: #{tpu_custom_call.1} parent=1 // pred_check
      _
    $region3: #{tpu_custom_call.1} parent=1 // pred_check_branch
      %9 = sbr.rel (0) target = $region5
    $region4: #{tpu_custom_call.1} parent=1 // pred_region
      %s11 = ssub.s32 1280, 1280
      %12 = vsyncadd [#allocation3], %s11
      %s13 = sshll.u32 [#allocation2], 4
      %s14 = int_to_ptr.vmem [resolvable:$true] %s13
      %19 = dma.hbm_to_vmem [thread:$0]  %s0, 1280, %s14, [#allocation3], 768, 640, 40
    $region5: #{tpu_custom_call.1} parent=1 // pred_fallthru
      _
    // Predicated region
    $region6: #{tpu_custom_call.1} parent=1 // pred_check
      _
    $region7: #{tpu_custom_call.1} parent=1 // pred_check_branch
      %21 = sbr.rel (0) target = $region9
    $region8: #{tpu_custom_call.1} parent=1 // pred_region
      %22 = dma.done [#allocation3], 1280
    $region9: #{tpu_custom_call.1} parent=1 // pred_fallthru
      _
    %v23 = vld [vmem:[#allocation2] sm:$0xff]
    %v24 = vld [vmem:[#allocation2 + $0x8] sm:$0xff]
    %v25 = vld [vmem:[#allocation2 + $0x10] sm:$0xff]
    %v26 = vld [vmem:[#allocation2 + $0x18] sm:$0xff]
    %v27 = vld [vmem:[#allocation2 + $0x20] sm:$0xff]
    %v28 = vld [vmem:[#allocation2 + $0x28] sm:$0xff]
    %v29 = vld [vmem:[#allocation2 + $0x30] sm:$0xff]
    %v30 = vld [vmem:[#allocation2 + $0x38] sm:$0xff]
    %v31 = vld [vmem:[#allocation2 + $0x40] sm:$0xff]
    %v32 = vld [vmem:[#allocation2 + $0x48] sm:$0xff]
    %33 = vst [vmem:[#allocation5] sm:$0xff] %v23
    %34 = vst [vmem:[#allocation5 + $0x8] sm:$0xff] %v24
    %35 = vst [vmem:[#allocation5 + $0x10] sm:$0xff] %v25
    %36 = vst [vmem:[#allocation5 + $0x18] sm:$0xff] %v26
    %37 = vst [vmem:[#allocation5 + $0x20] sm:$0xff] %v27
    %38 = vst [vmem:[#allocation5 + $0x28] sm:$0xff] %v28
    %39 = vst [vmem:[#allocation5 + $0x30] sm:$0xff] %v29
    %40 = vst [vmem:[#allocation5 + $0x38] sm:$0xff] %v30
    %41 = vst [vmem:[#allocation5 + $0x40] sm:$0xff] %v31
    %42 = vst [vmem:[#allocation5 + $0x48] sm:$0xff] %v32
    // Predicated region
    $region10: #{tpu_custom_call.1} parent=1 // pred_check
      _
    $region11: #{tpu_custom_call.1} parent=1 // pred_check_branch
      %44 = sbr.rel (0) target = $region13
    $region12: #{tpu_custom_call.1} parent=1 // pred_region
      %s46 = ssub.s32 1280, 1280
      %47 = vsyncadd [#allocation4], %s46
      %s48 = sshll.u32 [#allocation5], 4
      %s49 = int_to_ptr.vmem [resolvable:$true] %s48
      %54 = dma.vmem_to_hbm [thread:$0]  %s49, 1280, %s1, [#allocation4], 640, 640, 40
    $region13: #{tpu_custom_call.1} parent=1 // pred_fallthru
      _
    // Predicated region
    $region14: #{tpu_custom_call.1} parent=1 // pred_check
      _
    $region15: #{tpu_custom_call.1} parent=1 // pred_check_branch
      %56 = sbr.rel (0) target = $region17
    $region16: #{tpu_custom_call.1} parent=1 // pred_region
      %57 = dma.done [#allocation4], 1280
    $region17: #{tpu_custom_call.1} parent=1 // pred_fallthru
      _
    %58 = vsyncpa [#allocation3], 1
    %59 = vsyncpa [#allocation4], 1

</llo_original>
